<compile_context>
chip_gen: v7x
topology: tpu7x:2x2x1
jax: 0.10.0
libtpu: 0.0.40
codegen_flags: <defaults>
</compile_context>

<pallas_src>
import math
import functools

import jax
import jax.numpy as jnp
from jax import lax
from jax.experimental import pallas as pl


LANE = 128


def _round_up(x, m):
    return ((x + m - 1) // m) * m


# ----------------------------------------------------------------------------
# Fused encoder + decoder kernel (single invocation, everything in VMEM)
# ----------------------------------------------------------------------------
def _encoder_decoder_kernel(enc_in_ref, dec_in_ref,
                            w1_ref, b1_ref, w2_ref, b2_ref,
                            wq_ref, wk_ref, wv_ref, wo_ref, bo_ref,
                            o_ref, *, hidden):
    B, Se, Hp = enc_in_ref.shape
    _, Sd, _ = dec_in_ref.shape

    # ---------------- encoder: position-wise MLP ----------------------------
    # Fold batch into the sublane (M) axis: (B, Se, Hp) -> (B*Se, Hp).
    x = enc_in_ref[...].reshape(B * Se, Hp)
    h = jnp.dot(x, w1_ref[...], preferred_element_type=jnp.float32) + b1_ref[...]
    h = jnp.maximum(h, 0.0)
    enc = (jnp.dot(h.astype(w2_ref.dtype), w2_ref[...],
                   preferred_element_type=jnp.float32) + b2_ref[...])
    # `enc` is the decoder state (init_state == identity) and stays on-chip
    # in f32 -- no HBM round trip, no intermediate downcast.

    # ---------------- decoder: cross attention over the encoder output ------
    d = dec_in_ref[...].reshape(B * Sd, Hp)
    q = jnp.dot(d, wq_ref[...], preferred_element_type=jnp.float32)
    k = jnp.dot(enc.astype(wk_ref.dtype), wk_ref[...],
                preferred_element_type=jnp.float32)
    v = jnp.dot(enc.astype(wv_ref.dtype), wv_ref[...],
                preferred_element_type=jnp.float32)

    q = q.reshape(B, Sd, Hp)
    k = k.reshape(B, Se, Hp)
    v = v.reshape(B, Se, Hp)

    scale = 1.0 / math.sqrt(hidden)
    # Contract on H with B as a batch dim -- no explicit transpose of k.
    s = lax.dot_general(q, k,
                        dimension_numbers=(((2,), (2,)), ((0,), (0,))),
                        preferred_element_type=jnp.float32) * scale  # (B,Sd,Se)

    # numerically stable softmax over the encoder axis
    s = s - jnp.max(s, axis=-1, keepdims=True)
    p = jnp.exp(s)
    p = p * pl.reciprocal(jnp.sum(p, axis=-1, keepdims=True), approx=True)

    ctx = lax.dot_general(p.astype(v.dtype), v,
                          dimension_numbers=(((2,), (1,)), ((0,), (0,))),
                          preferred_element_type=jnp.float32)        # (B,Sd,Hp)

    out = (jnp.dot(ctx.reshape(B * Sd, Hp).astype(wo_ref.dtype), wo_ref[...],
                   preferred_element_type=jnp.float32) + bo_ref[...])
    o_ref[...] = out.reshape(B, Sd, Hp).astype(o_ref.dtype)


# ----------------------------------------------------------------------------
# Wrapper (pads hidden dim to a lane-dense multiple of 128, exact zero-padding)
# ----------------------------------------------------------------------------
def encoder_decoder_forward(encoder_input, decoder_input, params):
    """Mirrors EncoderDecoder.forward() with encoder+decoder fused on-chip."""
    B, Se, H = encoder_input.shape
    _, Sd, _ = decoder_input.shape
    Hp = _round_up(H, LANE)
    pad_h = Hp - H

    def pad_act(a):
        return jnp.pad(a, ((0, 0), (0, 0), (0, pad_h))) if pad_h else a

    def pad_mat(w):
        return jnp.pad(w, ((0, pad_h), (0, pad_h))) if pad_h else w

    def pad_vec(b):
        return jnp.pad(b, ((0, 0), (0, pad_h))) if pad_h else b

    enc_in = pad_act(encoder_input)
    dec_in = pad_act(decoder_input)
    w1, w2, wq, wk, wv, wo = (pad_mat(params[n])
                              for n in ("w1", "w2", "wq", "wk", "wv", "wo"))
    b1, b2, bo = (pad_vec(params[n]) for n in ("b1", "b2", "bo"))

    itemsize = jnp.dtype(encoder_input.dtype).itemsize
    flops = (2 * 2 * B * Se * Hp * Hp          # encoder MLP (2 matmuls)
             + 2 * B * Sd * Hp * Hp            # q projection
             + 2 * 2 * B * Se * Hp * Hp        # k, v projections
             + 2 * 2 * B * Sd * Se * Hp        # scores + context
             + 2 * B * Sd * Hp * Hp)           # output projection
    bytes_accessed = itemsize * (enc_in.size + dec_in.size
                                 + 6 * Hp * Hp + 3 * Hp + B * Sd * Hp)

    out = pl.pallas_call(
        functools.partial(_encoder_decoder_kernel, hidden=H),
        out_shape=jax.ShapeDtypeStruct((B, Sd, Hp), decoder_input.dtype),
        cost_estimate=pl.CostEstimate(flops=flops,
                                      transcendentals=B * Sd * Se,
                                      bytes_accessed=bytes_accessed),
    )(enc_in, dec_in, w1, b1, w2, b2, wq, wk, wv, wo, bo)

    return out[..., :H] if pad_h else out


# ----------------------------------------------------------------------------
# Pure-JAX reference (for correctness check)
# ----------------------------------------------------------------------------
def reference_forward(encoder_input, decoder_input, p):
    h = jnp.maximum(encoder_input @ p["w1"] + p["b1"], 0.0)
    enc = h @ p["w2"] + p["b2"]
    q = decoder_input @ p["wq"]
    k = enc @ p["wk"]
    v = enc @ p["wv"]
    s = jnp.einsum("bqh,bkh->bqk", q, k) / math.sqrt(encoder_input.shape[-1])
    a = jax.nn.softmax(s, axis=-1)
    ctx = jnp.einsum("bqk,bkh->bqh", a, v)
    return ctx @ p["wo"] + p["bo"]


# ----------------------------------------------------------------------------
if __name__ == "__main__":
    B, S_ENC, S_DEC, H = 2, 8, 8, 32

    key = jax.random.PRNGKey(0)
    ks = jax.random.split(key, 10)
    scale = 1.0 / math.sqrt(H)
    params = {
        "w1": jax.random.normal(ks[0], (H, H), jnp.float32) * scale,
        "b1": jax.random.normal(ks[1], (1, H), jnp.float32) * 0.01,
        "w2": jax.random.normal(ks[2], (H, H), jnp.float32) * scale,
        "b2": jax.random.normal(ks[3], (1, H), jnp.float32) * 0.01,
        "wq": jax.random.normal(ks[4], (H, H), jnp.float32) * scale,
        "wk": jax.random.normal(ks[5], (H, H), jnp.float32) * scale,
        "wv": jax.random.normal(ks[6], (H, H), jnp.float32) * scale,
        "wo": jax.random.normal(ks[7], (H, H), jnp.float32) * scale,
        "bo": jax.random.normal(ks[8], (1, H), jnp.float32) * 0.01,
    }

    encoder_input = jax.random.normal(ks[9], (B, S_ENC, H), jnp.float32)
    decoder_input = jax.random.normal(jax.random.PRNGKey(1), (B, S_DEC, H),
                                      jnp.float32)

    out = encoder_decoder_forward(encoder_input, decoder_input, params)
    out = jax.block_until_ready(out)

    ref = reference_forward(encoder_input, decoder_input, params)
    assert out.shape == (B, S_DEC, H)
    # tolerance slightly relaxed for pl.reciprocal(approx=True) in the softmax
    assert jnp.allclose(out, ref, atol=2e-3, rtol=2e-3), "mismatch vs reference"

    print("KERNEL_OK")
</pallas_src>

<mosaic_0001>
module attributes {stable_mosaic.version = 11 : i64} {
  func.func @_encoder_decoder_kernel(%arg0: memref<2x8x128xf32, #tpu.memory_space<vmem>>, %arg1: memref<2x8x128xf32, #tpu.memory_space<vmem>>, %arg2: memref<128x128xf32, #tpu.memory_space<vmem>>, %arg3: memref<1x128xf32, #tpu.memory_space<vmem>>, %arg4: memref<128x128xf32, #tpu.memory_space<vmem>>, %arg5: memref<1x128xf32, #tpu.memory_space<vmem>>, %arg6: memref<128x128xf32, #tpu.memory_space<vmem>>, %arg7: memref<128x128xf32, #tpu.memory_space<vmem>>, %arg8: memref<128x128xf32, #tpu.memory_space<vmem>>, %arg9: memref<128x128xf32, #tpu.memory_space<vmem>>, %arg10: memref<1x128xf32, #tpu.memory_space<vmem>>, %arg11: memref<2x8x128xf32, #tpu.memory_space<vmem>>) attributes {dimension_semantics = [], scalar_prefetch = 0 : i64, scratch_operands = 0 : i64, tpu.core_type = #tpu.core_type<tc>} {
    %c0 = arith.constant 0 : index
    %c0_0 = arith.constant 0 : index
    %c0_1 = arith.constant 0 : index
    %0 = vector.load %arg0[%c0, %c0_0, %c0_1] : memref<2x8x128xf32, #tpu.memory_space<vmem>>, vector<2x8x128xf32>
    %1 = vector.shape_cast %0 : vector<2x8x128xf32> to vector<16x128xf32>
    %c0_2 = arith.constant 0 : index
    %c0_3 = arith.constant 0 : index
    %2 = vector.load %arg2[%c0_2, %c0_3] : memref<128x128xf32, #tpu.memory_space<vmem>>, vector<128x128xf32>
    %cst = arith.constant dense<0.000000e+00> : vector<16x128xf32>
    %3 = tpu.matmul %1, %2, %cst {dimension_numbers = #tpu.dot_dimension_numbers<[1], [0], [0], [1], [0, 0, 1, 1], [], []>} : vector<16x128xf32>, vector<128x128xf32>, vector<16x128xf32> -> vector<16x128xf32>
    %c0_4 = arith.constant 0 : index
    %c0_5 = arith.constant 0 : index
    %4 = vector.load %arg3[%c0_4, %c0_5] : memref<1x128xf32, #tpu.memory_space<vmem>>, vector<1x128xf32>
    %5 = vector.broadcast %4 : vector<1x128xf32> to vector<16x128xf32>
    %6 = arith.addf %3, %5 : vector<16x128xf32>
    %cst_6 = arith.constant 0.000000e+00 : f32
    %7 = vector.broadcast %cst_6 : f32 to vector<16x128xf32>
    %8 = arith.maximumf %6, %7 : vector<16x128xf32>
    %c0_7 = arith.constant 0 : index
    %c0_8 = arith.constant 0 : index
    %9 = vector.load %arg4[%c0_7, %c0_8] : memref<128x128xf32, #tpu.memory_space<vmem>>, vector<128x128xf32>
    %cst_9 = arith.constant dense<0.000000e+00> : vector<16x128xf32>
    %10 = tpu.matmul %8, %9, %cst_9 {dimension_numbers = #tpu.dot_dimension_numbers<[1], [0], [0], [1], [0, 0, 1, 1], [], []>} : vector<16x128xf32>, vector<128x128xf32>, vector<16x128xf32> -> vector<16x128xf32>
    %c0_10 = arith.constant 0 : index
    %c0_11 = arith.constant 0 : index
    %11 = vector.load %arg5[%c0_10, %c0_11] : memref<1x128xf32, #tpu.memory_space<vmem>>, vector<1x128xf32>
    %12 = vector.broadcast %11 : vector<1x128xf32> to vector<16x128xf32>
    %13 = arith.addf %10, %12 : vector<16x128xf32>
    %c0_12 = arith.constant 0 : index
    %c0_13 = arith.constant 0 : index
    %c0_14 = arith.constant 0 : index
    %14 = vector.load %arg1[%c0_12, %c0_13, %c0_14] : memref<2x8x128xf32, #tpu.memory_space<vmem>>, vector<2x8x128xf32>
    %15 = vector.shape_cast %14 : vector<2x8x128xf32> to vector<16x128xf32>
    %c0_15 = arith.constant 0 : index
    %c0_16 = arith.constant 0 : index
    %16 = vector.load %arg6[%c0_15, %c0_16] : memref<128x128xf32, #tpu.memory_space<vmem>>, vector<128x128xf32>
    %cst_17 = arith.constant dense<0.000000e+00> : vector<16x128xf32>
    %17 = tpu.matmul %15, %16, %cst_17 {dimension_numbers = #tpu.dot_dimension_numbers<[1], [0], [0], [1], [0, 0, 1, 1], [], []>} : vector<16x128xf32>, vector<128x128xf32>, vector<16x128xf32> -> vector<16x128xf32>
    %c0_18 = arith.constant 0 : index
    %c0_19 = arith.constant 0 : index
    %18 = vector.load %arg7[%c0_18, %c0_19] : memref<128x128xf32, #tpu.memory_space<vmem>>, vector<128x128xf32>
    %cst_20 = arith.constant dense<0.000000e+00> : vector<16x128xf32>
    %19 = tpu.matmul %13, %18, %cst_20 {dimension_numbers = #tpu.dot_dimension_numbers<[1], [0], [0], [1], [0, 0, 1, 1], [], []>} : vector<16x128xf32>, vector<128x128xf32>, vector<16x128xf32> -> vector<16x128xf32>
    %c0_21 = arith.constant 0 : index
    %c0_22 = arith.constant 0 : index
    %20 = vector.load %arg8[%c0_21, %c0_22] : memref<128x128xf32, #tpu.memory_space<vmem>>, vector<128x128xf32>
    %cst_23 = arith.constant dense<0.000000e+00> : vector<16x128xf32>
    %21 = tpu.matmul %13, %20, %cst_23 {dimension_numbers = #tpu.dot_dimension_numbers<[1], [0], [0], [1], [0, 0, 1, 1], [], []>} : vector<16x128xf32>, vector<128x128xf32>, vector<16x128xf32> -> vector<16x128xf32>
    %22 = vector.shape_cast %17 : vector<16x128xf32> to vector<2x8x128xf32>
    %23 = vector.shape_cast %19 : vector<16x128xf32> to vector<2x8x128xf32>
    %24 = vector.shape_cast %21 : vector<16x128xf32> to vector<2x8x128xf32>
    %cst_24 = arith.constant dense<0.000000e+00> : vector<2x8x8xf32>
    %25 = tpu.matmul %22, %23, %cst_24 {dimension_numbers = #tpu.dot_dimension_numbers<[2], [2], [1], [1], [0, 0, 0, 1, 1, 1], [0], [0]>} : vector<2x8x128xf32>, vector<2x8x128xf32>, vector<2x8x8xf32> -> vector<2x8x8xf32>
    %cst_25 = arith.constant 0.176776692 : f32
    %26 = vector.broadcast %cst_25 : f32 to vector<2x8x8xf32>
    %27 = arith.mulf %25, %26 : vector<2x8x8xf32>
    %cst_26 = arith.constant dense<0xFF800000> : vector<2x8xf32>
    %28 = vector.multi_reduction <maximumf>, %27, %cst_26 [2] : vector<2x8x8xf32> to vector<2x8xf32>
    %29 = vector.shape_cast %28 : vector<2x8xf32> to vector<2x8x1xf32>
    %30 = vector.broadcast %29 : vector<2x8x1xf32> to vector<2x8x8xf32>
    %31 = arith.subf %27, %30 : vector<2x8x8xf32>
    %32 = math.exp %31 : vector<2x8x8xf32>
    %cst_27 = arith.constant dense<0.000000e+00> : vector<2x8xf32>
    %33 = vector.multi_reduction <add>, %32, %cst_27 [2] : vector<2x8x8xf32> to vector<2x8xf32>
    %34 = vector.shape_cast %33 : vector<2x8xf32> to vector<2x8x1xf32>
    %35 = tpu.reciprocal %34 {approx = true} : vector<2x8x1xf32> -> vector<2x8x1xf32>
    %36 = vector.broadcast %35 : vector<2x8x1xf32> to vector<2x8x8xf32>
    %37 = arith.mulf %32, %36 : vector<2x8x8xf32>
    %cst_28 = arith.constant dense<0.000000e+00> : vector<2x8x128xf32>
    %38 = tpu.matmul %37, %24, %cst_28 {dimension_numbers = #tpu.dot_dimension_numbers<[2], [1], [1], [2], [0, 0, 0, 1, 1, 2], [0], [0]>} : vector<2x8x8xf32>, vector<2x8x128xf32>, vector<2x8x128xf32> -> vector<2x8x128xf32>
    %39 = vector.shape_cast %38 : vector<2x8x128xf32> to vector<16x128xf32>
    %c0_29 = arith.constant 0 : index
    %c0_30 = arith.constant 0 : index
    %40 = vector.load %arg9[%c0_29, %c0_30] : memref<128x128xf32, #tpu.memory_space<vmem>>, vector<128x128xf32>
    %cst_31 = arith.constant dense<0.000000e+00> : vector<16x128xf32>
    %41 = tpu.matmul %39, %40, %cst_31 {dimension_numbers = #tpu.dot_dimension_numbers<[1], [0], [0], [1], [0, 0, 1, 1], [], []>} : vector<16x128xf32>, vector<128x128xf32>, vector<16x128xf32> -> vector<16x128xf32>
    %c0_32 = arith.constant 0 : index
    %c0_33 = arith.constant 0 : index
    %42 = vector.load %arg10[%c0_32, %c0_33] : memref<1x128xf32, #tpu.memory_space<vmem>>, vector<1x128xf32>
    %43 = vector.broadcast %42 : vector<1x128xf32> to vector<16x128xf32>
    %44 = arith.addf %41, %43 : vector<16x128xf32>
    %45 = vector.shape_cast %44 : vector<16x128xf32> to vector<2x8x128xf32>
    %c0_34 = arith.constant 0 : index
    %c0_35 = arith.constant 0 : index
    %c0_36 = arith.constant 0 : index
    %46 = vector.load %arg11[%c0_34, %c0_35, %c0_36] : memref<2x8x128xf32, #tpu.memory_space<vmem>>, vector<2x8x128xf32>
    tpu.vector_store %arg11[%c0_34, %c0_35, %c0_36], %45 {strides = array<i32>} : memref<2x8x128xf32, #tpu.memory_space<vmem>>, vector<2x8x128xf32>,
    return
  }
}

</mosaic_0001>

<llo_original>
// kernel: tpu_custom_call.1
$region0: #{tpu_custom_call.1}
  #allocation0 [shape = 'u32[]', space=smem, size = 0x4, offset = 0x4, fixed_abs, tag = 'smem constant byte address 0x4 - core index']
  #allocation1 [shape = 'u32[144,128]{1,0:T(1,128)}', space=vmem, size = 0x12000, scoped, tag = 'internal scratch']
  %s0 = inlined_call_operand.hbm [shape: f32[2,8,128], index: 0, kind: input, shape index: {}]
  %s1 = inlined_call_operand.hbm [shape: f32[2,8,128], index: 1, kind: input, shape index: {}]
  %s2 = inlined_call_operand.hbm [shape: f32[128,128], index: 2, kind: input, shape index: {}]
  %s3 = inlined_call_operand.vmem [shape: f32[1,128], index: 3, kind: input, shape index: {}]
  %s4 = inlined_call_operand.hbm [shape: f32[128,128], index: 4, kind: input, shape index: {}]
  %s5 = inlined_call_operand.vmem [shape: f32[1,128], index: 5, kind: input, shape index: {}]
  %s6 = inlined_call_operand.hbm [shape: f32[128,128], index: 6, kind: input, shape index: {}]
  %s7 = inlined_call_operand.hbm [shape: f32[128,128], index: 7, kind: input, shape index: {}]
  %s8 = inlined_call_operand.hbm [shape: f32[128,128], index: 8, kind: input, shape index: {}]
  %s9 = inlined_call_operand.hbm [shape: f32[128,128], index: 9, kind: input, shape index: {}]
  %s10 = inlined_call_operand.vmem [shape: f32[1,128], index: 10, kind: input, shape index: {}]
  %s11 = inlined_call_operand.hbm [shape: f32[2,8,128], index: 11, kind: output, shape index: {}]
  %s12 = sld [smem:[#allocation0]]
  $region86: #{tpu_custom_call.1} parent=0
    _
  %s14 = ssub.s32 1, %s12
  %s15 = scalar_select 0, %s14, %s12
  $region1: #{tpu_custom_call.1} parent=0
    #allocation2 [shape = 'u8[8192]{0}', space=vmem, size = 0x2000, scoped, tag = 'input window, operand 0, single buffered']
    #allocation3 [shape = 's32[1]{0}', space=sflag, size = 0x4, scoped, tag = 'scoped memory for tpu_custom_call.1']
    #allocation4 [shape = 's32[1]{0}', space=sflag, size = 0x4, scoped, tag = 'scoped memory for tpu_custom_call.1']
    #allocation5 [shape = 'u8[8192]{0}', space=vmem, size = 0x2000, scoped, tag = 'input window, operand 1, single buffered']
    #allocation6 [shape = 's32[1]{0}', space=sflag, size = 0x4, scoped, tag = 'scoped memory for tpu_custom_call.1']
    #allocation7 [shape = 'u8[65536]{0}', space=vmem, size = 0x10000, scoped, tag = 'input window, operand 2, single buffered']
    #allocation8 [shape = 'u8[65536]{0}', space=vmem, size = 0x10000, scoped, tag = 'input window, operand 4, single buffered']
    #allocation9 [shape = 's32[1]{0}', space=sflag, size = 0x4, scoped, tag = 'scoped memory for tpu_custom_call.1']
    #allocation10 [shape = 'u8[65536]{0}', space=vmem, size = 0x10000, scoped, tag = 'input window, operand 6, single buffered']
    #allocation11 [shape = 'u8[65536]{0}', space=vmem, size = 0x10000, scoped, tag = 'input window, operand 7, single buffered']
    #allocation12 [shape = 's32[1]{0}', space=sflag, size = 0x4, scoped, tag = 'scoped memory for tpu_custom_call.1']
    #allocation13 [shape = 'u8[65536]{0}', space=vmem, size = 0x10000, scoped, tag = 'input window, operand 8, single buffered']
    #allocation14 [shape = 'u8[65536]{0}', space=vmem, size = 0x10000, scoped, tag = 'input window, operand 9, single buffered']
    #allocation15 [shape = 's32[1]{0}', space=sflag, size = 0x4, scoped, tag = 'scoped memory for tpu_custom_call.1']
    #allocation16 [shape = 'u8[8192]{0}', space=vmem, size = 0x2000, scoped, tag = 'output window, operand 0, single buffered']
    %16 = vsyncpa [#allocation3], 0
    %17 = vsyncpa [#allocation6], 0
    %18 = vsyncpa [#allocation9], 0
    %19 = vsyncpa [#allocation12], 0
    %20 = vsyncpa [#allocation15], 0
    %21 = vsyncpa [#allocation4], 0
    // Predicated region
    $region2: #{tpu_custom_call.1} parent=1 // pred_check
      _
    $region3: #{tpu_custom_call.1} parent=1 // pred_check_branch
      %23 = sbr.rel (0) target = $region5
    $region4: #{tpu_custom_call.1} parent=1 // pred_region
      %s25 = ssub.s32 256, 256
      %26 = vsyncadd [#allocation3], %s25
      %s27 = sshll.u32 [#allocation2], 4
      %s28 = int_to_ptr.vmem [resolvable:$true] %s27
      %33 = dma.hbm_to_vmem [thread:$0]  %s0, 256, %s28, [#allocation3], 128, 128, 8
    $region5: #{tpu_custom_call.1} parent=1 // pred_fallthru
      _
    // Predicated region
    $region6: #{tpu_custom_call.1} parent=1 // pred_check
      _
    $region7: #{tpu_custom_call.1} parent=1 // pred_check_branch
      %35 = sbr.rel (0) target = $region9
    $region8: #{tpu_custom_call.1} parent=1 // pred_region
      %s37 = ssub.s32 256, 256
      %38 = vsyncadd [#allocation6], %s37
      %s39 = sshll.u32 [#allocation5], 4
      %s40 = int_to_ptr.vmem [resolvable:$true] %s39
      %45 = dma.hbm_to_vmem [thread:$0]  %s1, 256, %s40, [#allocation6], 128, 128, 8
    $region9: #{tpu_custom_call.1} parent=1 // pred_fallthru
      _
    // Predicated region
    $region10: #{tpu_custom_call.1} parent=1 // pred_check
      _
    $region11: #{tpu_custom_call.1} parent=1 // pred_check_branch
      %47 = sbr.rel (0) target = $region13
    $region12: #{tpu_custom_call.1} parent=1 // pred_region
      %s49 = ssub.s32 2048, 2048
      %50 = vsyncadd [#allocation6], %s49
      %s51 = sshll.u32 [#allocation7], 4
      %s52 = int_to_ptr.vmem [resolvable:$true] %s51
      %57 = dma.hbm_to_vmem [thread:$0]  %s2, 2048, %s52, [#allocation6], 128, 128, 8
    $region13: #{tpu_custom_call.1} parent=1 // pred_fallthru
      _
    // Predicated region
    $region14: #{tpu_custom_call.1} parent=1 // pred_check
      _
    $region15: #{tpu_custom_call.1} parent=1 // pred_check_branch
      %59 = sbr.rel (0) target = $region17
    $region16: #{tpu_custom_call.1} parent=1 // pred_region
      _
    $region17: #{tpu_custom_call.1} parent=1 // pred_fallthru
      _
    // Predicated region
    $region18: #{tpu_custom_call.1} parent=1 // pred_check
      _
    $region19: #{tpu_custom_call.1} parent=1 // pred_check_branch
      %61 = sbr.rel (0) target = $region21
    $region20: #{tpu_custom_call.1} parent=1 // pred_region
      %s63 = ssub.s32 2048, 2048
      %64 = vsyncadd [#allocation9], %s63
      %s65 = sshll.u32 [#allocation8], 4
      %s66 = int_to_ptr.vmem [resolvable:$true] %s65
      %71 = dma.hbm_to_vmem [thread:$0]  %s4, 2048, %s66, [#allocation9], 128, 128, 8
    $region21: #{tpu_custom_call.1} parent=1 // pred_fallthru
      _
    // Predicated region
    $region22: #{tpu_custom_call.1} parent=1 // pred_check
      _
    $region23: #{tpu_custom_call.1} parent=1 // pred_check_branch
      %73 = sbr.rel (0) target = $region25
    $region24: #{tpu_custom_call.1} parent=1 // pred_region
      _
    $region25: #{tpu_custom_call.1} parent=1 // pred_fallthru
      _
    // Predicated region
    $region26: #{tpu_custom_call.1} parent=1 // pred_check
      _
    $region27: #{tpu_custom_call.1} parent=1 // pred_check_branch
      %75 = sbr.rel (0) target = $region29
    $region28: #{tpu_custom_call.1} parent=1 // pred_region
      %s77 = ssub.s32 2048, 2048
      %78 = vsyncadd [#allocation9], %s77
      %s79 = sshll.u32 [#allocation10], 4
      %s80 = int_to_ptr.vmem [resolvable:$true] %s79
      %85 = dma.hbm_to_vmem [thread:$0]  %s6, 2048, %s80, [#allocation9], 128, 128, 8
    $region29: #{tpu_custom_call.1} parent=1 // pred_fallthru
      _
    // Predicated region
    $region30: #{tpu_custom_call.1} parent=1 // pred_check
      _
    $region31: #{tpu_custom_call.1} parent=1 // pred_check_branch
      %87 = sbr.rel (0) target = $region33
    $region32: #{tpu_custom_call.1} parent=1 // pred_region
      %s89 = ssub.s32 2048, 2048
      %90 = vsyncadd [#allocation12], %s89
      %s91 = sshll.u32 [#allocation11], 4
      %s92 = int_to_ptr.vmem [resolvable:$true] %s91
      %97 = dma.hbm_to_vmem [thread:$0]  %s7, 2048, %s92, [#allocation12], 128, 128, 8
    $region33: #{tpu_custom_call.1} parent=1 // pred_fallthru
      _
    // Predicated region
    $region34: #{tpu_custom_call.1} parent=1 // pred_check
      _
    $region35: #{tpu_custom_call.1} parent=1 // pred_check_branch
      %99 = sbr.rel (0) target = $region37
    $region36: #{tpu_custom_call.1} parent=1 // pred_region
      %s101 = ssub.s32 2048, 2048
      %102 = vsyncadd [#allocation12], %s101
      %s103 = sshll.u32 [#allocation13], 4
      %s104 = int_to_ptr.vmem [resolvable:$true] %s103
      %109 = dma.hbm_to_vmem [thread:$0]  %s8, 2048, %s104, [#allocation12], 128, 128, 8
    $region37: #{tpu_custom_call.1} parent=1 // pred_fallthru
      _
    // Predicated region
    $region38: #{tpu_custom_call.1} parent=1 // pred_check
      _
    $region39: #{tpu_custom_call.1} parent=1 // pred_check_branch
      %111 = sbr.rel (0) target = $region41
    $region40: #{tpu_custom_call.1} parent=1 // pred_region
      %s113 = ssub.s32 2048, 2048
      %114 = vsyncadd [#allocation15], %s113
      %s115 = sshll.u32 [#allocation14], 4
      %s116 = int_to_ptr.vmem [resolvable:$true] %s115
      %121 = dma.hbm_to_vmem [thread:$0]  %s9, 2048, %s116, [#allocation15], 128, 128, 8
    $region41: #{tpu_custom_call.1} parent=1 // pred_fallthru
      _
    // Predicated region
    $region42: #{tpu_custom_call.1} parent=1 // pred_check
      _
    $region43: #{tpu_custom_call.1} parent=1 // pred_check_branch
      %123 = sbr.rel (0) target = $region45
    $region44: #{tpu_custom_call.1} parent=1 // pred_region
      _
    $region45: #{tpu_custom_call.1} parent=1 // pred_fallthru
      _
    // Predicated region
    $region46: #{tpu_custom_call.1} parent=1 // pred_check
      _
    $region47: #{tpu_custom_call.1} parent=1 // pred_check_branch
      %125 = sbr.rel (0) target = $region49
    $region48: #{tpu_custom_call.1} parent=1 // pred_region
      %126 = dma.done [#allocation3], 256
    $region49: #{tpu_custom_call.1} parent=1 // pred_fallthru
      _
    // Predicated region
    $region50: #{tpu_custom_call.1} parent=1 // pred_check
      _
    $region51: #{tpu_custom_call.1} parent=1 // pred_check_branch
      %128 = sbr.rel (0) target = $region53
    $region52: #{tpu_custom_call.1} parent=1 // pred_region
      %129 = dma.done [#allocation6], 256
    $region53: #{tpu_custom_call.1} parent=1 // pred_fallthru
      _
    // Predicated region
    $region54: #{tpu_custom_call.1} parent=1 // pred_check
      _
    $region55: #{tpu_custom_call.1} parent=1 // pred_check_branch
      %131 = sbr.rel (0) target = $region57
    $region56: #{tpu_custom_call.1} parent=1 // pred_region
      %132 = dma.done [#allocation6], 2048
    $region57: #{tpu_custom_call.1} parent=1 // pred_fallthru
      _
    // Predicated region
    $region58: #{tpu_custom_call.1} parent=1 // pred_check
      _
    $region59: #{tpu_custom_call.1} parent=1 // pred_check_branch
      %134 = sbr.rel (0) target = $region61
    $region60: #{tpu_custom_call.1} parent=1 // pred_region
      %135 = dma.done [#allocation9], 2048
    $region61: #{tpu_custom_call.1} parent=1 // pred_fallthru
      _
    // Predicated region
    $region62: #{tpu_custom_call.1} parent=1 // pred_check
      _
    $region63: #{tpu_custom_call.1} parent=1 // pred_check_branch
      %137 = sbr.rel (0) target = $region65
    $region64: #{tpu_custom_call.1} parent=1 // pred_region
      %138 = dma.done [#allocation9], 2048
    $region65: #{tpu_custom_call.1} parent=1 // pred_fallthru
      _
    // Predicated region
    $region66: #{tpu_custom_call.1} parent=1 // pred_check
      _
    $region67: #{tpu_custom_call.1} parent=1 // pred_check_branch
      %140 = sbr.rel (0) target = $region69
    $region68: #{tpu_custom_call.1} parent=1 // pred_region
      %141 = dma.done [#allocation12], 2048
    $region69: #{tpu_custom_call.1} parent=1 // pred_fallthru
      _
    // Predicated region
    $region70: #{tpu_custom_call.1} parent=1 // pred_check
      _
    $region71: #{tpu_custom_call.1} parent=1 // pred_check_branch
      %143 = sbr.rel (0) target = $region73
    $region72: #{tpu_custom_call.1} parent=1 // pred_region
      %144 = dma.done [#allocation12], 2048
    $region73: #{tpu_custom_call.1} parent=1 // pred_fallthru
      _
    // Predicated region
    $region74: #{tpu_custom_call.1} parent=1 // pred_check
      _
    $region75: #{tpu_custom_call.1} parent=1 // pred_check_branch
      %146 = sbr.rel (0) target = $region77
    $region76: #{tpu_custom_call.1} parent=1 // pred_region
      %147 = dma.done [#allocation15], 2048
    $region77: #{tpu_custom_call.1} parent=1 // pred_fallthru
      _
    %v148 = vld [vmem:[#allocation2] sm:$0xff]
    %v149 = vld [vmem:[#allocation2 + $0x8] sm:$0xff]
    %v150 = vld [vmem:[#allocation7] sm:$0xff]
    %v151 = vld [vmem:[#allocation7 + $0x8] sm:$0xff]
    %v152 = vld [vmem:[#allocation7 + $0x10] sm:$0xff]
    %v153 = vld [vmem:[#allocation7 + $0x18] sm:$0xff]
    %v154 = vld [vmem:[#allocation7 + $0x20] sm:$0xff]
    %v155 = vld [vmem:[#allocation7 + $0x28] sm:$0xff]
    %v156 = vld [vmem:[#allocation7 + $0x30] sm:$0xff]
    %v157 = vld [vmem:[#allocation7 + $0x38] sm:$0xff]
    %v158 = vld [vmem:[#allocation7 + $0x40] sm:$0xff]
    %v159 = vld [vmem:[#allocation7 + $0x48] sm:$0xff]
    %v160 = vld [vmem:[#allocation7 + $0x50] sm:$0xff]
    %v161 = vld [vmem:[#allocation7 + $0x58] sm:$0xff]
    %v162 = vld [vmem:[#allocation7 + $0x60] sm:$0xff]
    %v163 = vld [vmem:[#allocation7 + $0x68] sm:$0xff]
    %v164 = vld [vmem:[#allocation7 + $0x70] sm:$0xff]
    %v165 = vld [vmem:[#allocation7 + $0x78] sm:$0xff]
    %v166 = vld [vmem:[%s3] sm:$0x1]
    %v168 = vlaneseq
    %v169 = vshrl.u32 %v168, 7
    %v170 = vsub.s32 0, %v169
    %v171 = vrot.slane %v166, %v170
    %173 = vmatprep.subr.mxu0 0.0
    %174 = vmatpush1.msra.mxu0 %v150
    %175 = vmatprep.subr.mxu0 0.0
    %176 = vmatpush1.msra.mxu0 %v151
    %177 = vmatprep.subr.mxu0 0.0
    %178 = vmatpush1.msra.mxu0 %v152
    %179 = vmatprep.subr.mxu0 0.0
    %180 = vmatpush1.msra.mxu0 %v153
    %181 = vmatprep.subr.mxu0 0.0
    %182 = vmatpush1.msra.mxu0 %v154
    %183 = vmatprep.subr.mxu0 0.0
    %184 = vmatpush1.msra.mxu0 %v155
    %185 = vmatprep.subr.mxu0 0.0
    %186 = vmatpush1.msra.mxu0 %v156
    %187 = vmatprep.subr.mxu0 0.0
    %188 = vmatpush1.msra.mxu0 %v157
    %189 = vmatprep.subr.mxu0 0.0
    %190 = vmatpush1.msra.mxu0 %v158
    %191 = vmatprep.subr.mxu0 0.0
    %192 = vmatpush1.msra.mxu0 %v159
    %193 = vmatprep.subr.mxu0 0.0
    %194 = vmatpush1.msra.mxu0 %v160
    %195 = vmatprep.subr.mxu0 0.0
    %196 = vmatpush1.msra.mxu0 %v161
    %197 = vmatprep.subr.mxu0 0.0
    %198 = vmatpush1.msra.mxu0 %v162
    %199 = vmatprep.subr.mxu0 0.0
    %200 = vmatpush1.msra.mxu0 %v163
    %201 = vmatprep.subr.mxu0 0.0
    %202 = vmatpush1.msra.mxu0 %v164
    %203 = vmatprep.subr.mxu0 0.0
    %204 = vmatpush1.msra.mxu0 %v165
    %205 = vmatprep.subr.mxu0 0.0
    %206 = vmatpush1.msra.mxu0 0.0
    %207 = vmatprep.subr.mxu0 0.0
    %208 = vmatpush1.msra.mxu0 0.0
    %209 = vmatprep.subr.mxu0 0.0
    %210 = vmatpush1.msra.mxu0 0.0
    %211 = vmatprep.subr.mxu0 0.0
    %212 = vmatpush1.msra.mxu0 0.0
    %213 = vmatprep.subr.mxu0 0.0
    %214 = vmatpush1.msra.mxu0 0.0
    %215 = vmatprep.subr.mxu0 0.0
    %216 = vmatpush1.msra.mxu0 0.0
    %217 = vmatprep.subr.mxu0 0.0
    %218 = vmatpush1.msra.mxu0 0.0
    %219 = vmatprep.subr.mxu0 0.0
    %220 = vmatpush1.msra.mxu0 0.0
    %221 = vmatprep.subr.mxu0 0.0
    %222 = vmatpush1.msra.mxu0 0.0
    %223 = vmatprep.subr.mxu0 0.0
    %224 = vmatpush1.msra.mxu0 0.0
    %225 = vmatprep.subr.mxu0 0.0
    %226 = vmatpush1.msra.mxu0 0.0
    %227 = vmatprep.subr.mxu0 0.0
    %228 = vmatpush1.msra.mxu0 0.0
    %229 = vmatprep.subr.mxu0 0.0
    %230 = vmatpush1.msra.mxu0 0.0
    %231 = vmatprep.subr.mxu0 0.0
    %232 = vmatpush1.msra.mxu0 0.0
    %233 = vmatprep.subr.mxu0 0.0
    %234 = vmatpush1.msra.mxu0 0.0
    %235 = vmatprep.subr.mxu0 0.0
    %236 = vmatpush1.msra.mxu0 0.0
    %237 = vmatprep.mubr.f32.mxu0 0.0
    %238 = vmatmul.mubr.f32.gmra.mrb[0].mxu0 %v148
    %v239 = vpop.f32.mrb[0].mxu0
    %v240 = vadd.f32 %v171, %v239
    %v241 = vpop.f32.mrb[0].mxu0
    %242 = vmatprep.mubr.f32.mxu0 0.0
    %243 = vmatmul.mubr.f32.gmra.mrb[0].mxu0 %v149
    %v244 = vpop.f32.mrb[0].mxu0
    %v245 = vadd.f32 %v171, %v244
    %v246 = vpop.f32.mrb[0].mxu0
    %247 = vdwg.mxu0
    %v248 = vmax.f32 %v240, 0.0
    %v249 = vmax.f32 %v245, 0.0
    %v250 = vld [vmem:[#allocation8] sm:$0xff]
    %v251 = vld [vmem:[#allocation8 + $0x8] sm:$0xff]
    %v252 = vld [vmem:[#allocation8 + $0x10] sm:$0xff]
    %v253 = vld [vmem:[#allocation8 + $0x18] sm:$0xff]
    %v254 = vld [vmem:[#allocation8 + $0x20] sm:$0xff]
    %v255 = vld [vmem:[#allocation8 + $0x28] sm:$0xff]
    %v256 = vld [vmem:[#allocation8 + $0x30] sm:$0xff]
    %v257 = vld [vmem:[#allocation8 + $0x38] sm:$0xff]
    %v258 = vld [vmem:[#allocation8 + $0x40] sm:$0xff]
    %v259 = vld [vmem:[#allocation8 + $0x48] sm:$0xff]
    %v260 = vld [vmem:[#allocation8 + $0x50] sm:$0xff]
    %v261 = vld [vmem:[#allocation8 + $0x58] sm:$0xff]
    %v262 = vld [vmem:[#allocation8 + $0x60] sm:$0xff]
    %v263 = vld [vmem:[#allocation8 + $0x68] sm:$0xff]
    %v264 = vld [vmem:[#allocation8 + $0x70] sm:$0xff]
    %v265 = vld [vmem:[#allocation8 + $0x78] sm:$0xff]
    %v266 = vld [vmem:[%s5] sm:$0x1]
    %v268 = vlaneseq
    %v269 = vshrl.u32 %v268, 7
    %v270 = vsub.s32 0, %v269
    %v271 = vrot.slane %v266, %v270
    %273 = vmatprep.subr.mxu0 0.0
    %274 = vmatpush1.msra.mxu0 %v250
    %275 = vmatprep.subr.mxu0 0.0
    %276 = vmatpush1.msra.mxu0 %v251
    %277 = vmatprep.subr.mxu0 0.0
    %278 = vmatpush1.msra.mxu0 %v252
    %279 = vmatprep.subr.mxu0 0.0
    %280 = vmatpush1.msra.mxu0 %v253
    %281 = vmatprep.subr.mxu0 0.0
    %282 = vmatpush1.msra.mxu0 %v254
    %283 = vmatprep.subr.mxu0 0.0
    %284 = vmatpush1.msra.mxu0 %v255
    %285 = vmatprep.subr.mxu0 0.0
    %286 = vmatpush1.msra.mxu0 %v256
    %287 = vmatprep.subr.mxu0 0.0
    %288 = vmatpush1.msra.mxu0 %v257
    %289 = vmatprep.subr.mxu0 0.0
    %290 = vmatpush1.msra.mxu0 %v258
    %291 = vmatprep.subr.mxu0 0.0
    %292 = vmatpush1.msra.mxu0 %v259
    %293 = vmatprep.subr.mxu0 0.0
    %294 = vmatpush1.msra.mxu0 %v260
    %295 = vmatprep.subr.mxu0 0.0
    %296 = vmatpush1.msra.mxu0 %v261
    %297 = vmatprep.subr.mxu0 0.0
    %298 = vmatpush1.msra.mxu0 %v262
    %299 = vmatprep.subr.mxu0 0.0
    %300 = vmatpush1.msra.mxu0 %v263
    %301 = vmatprep.subr.mxu0 0.0
    %302 = vmatpush1.msra.mxu0 %v264
    %303 = vmatprep.subr.mxu0 0.0
    %304 = vmatpush1.msra.mxu0 %v265
    %305 = vmatprep.subr.mxu0 0.0
    %306 = vmatpush1.msra.mxu0 0.0
    %307 = vmatprep.subr.mxu0 0.0
    %308 = vmatpush1.msra.mxu0 0.0
    %309 = vmatprep.subr.mxu0 0.0
    %310 = vmatpush1.msra.mxu0 0.0
    %311 = vmatprep.subr.mxu0 0.0
    %312 = vmatpush1.msra.mxu0 0.0
    %313 = vmatprep.subr.mxu0 0.0
    %314 = vmatpush1.msra.mxu0 0.0
    %315 = vmatprep.subr.mxu0 0.0
    %316 = vmatpush1.msra.mxu0 0.0
    %317 = vmatprep.subr.mxu0 0.0
    %318 = vmatpush1.msra.mxu0 0.0
    %319 = vmatprep.subr.mxu0 0.0
    %320 = vmatpush1.msra.mxu0 0.0
    %321 = vmatprep.subr.mxu0 0.0
    %322 = vmatpush1.msra.mxu0 0.0
    %323 = vmatprep.subr.mxu0 0.0
    %324 = vmatpush1.msra.mxu0 0.0
    %325 = vmatprep.subr.mxu0 0.0
    %326 = vmatpush1.msra.mxu0 0.0
    %327 = vmatprep.subr.mxu0 0.0
    %328 = vmatpush1.msra.mxu0 0.0
    %329 = vmatprep.subr.mxu0 0.0
    %330 = vmatpush1.msra.mxu0 0.0
    %331 = vmatprep.subr.mxu0 0.0
    %332 = vmatpush1.msra.mxu0 0.0
    %333 = vmatprep.subr.mxu0 0.0
    %334 = vmatpush1.msra.mxu0 0.0
    %335 = vmatprep.subr.mxu0 0.0
    %336 = vmatpush1.msra.mxu0 0.0
    %337 = vmatprep.mubr.f32.mxu0 0.0
    %338 = vmatmul.mubr.f32.gmra.mrb[0].mxu0 %v248
    %v339 = vpop.f32.mrb[0].mxu0
    %v340 = vadd.f32 %v271, %v339
    %v341 = vpop.f32.mrb[0].mxu0
    %342 = vmatprep.mubr.f32.mxu0 0.0
    %343 = vmatmul.mubr.f32.gmra.mrb[0].mxu0 %v249
    %v344 = vpop.f32.mrb[0].mxu0
    %v345 = vadd.f32 %v271, %v344
    %v346 = vpop.f32.mrb[0].mxu0
    %347 = vdwg.mxu0
    %v348 = vld [vmem:[#allocation5] sm:$0xff]
    %v349 = vld [vmem:[#allocation5 + $0x8] sm:$0xff]
    %v350 = vld [vmem:[#allocation10] sm:$0xff]
    %v351 = vld [vmem:[#allocation10 + $0x8] sm:$0xff]
    %v352 = vld [vmem:[#allocation10 + $0x10] sm:$0xff]
    %v353 = vld [vmem:[#allocation10 + $0x18] sm:$0xff]
    %v354 = vld [vmem:[#allocation10 + $0x20] sm:$0xff]
    %v355 = vld [vmem:[#allocation10 + $0x28] sm:$0xff]
    %v356 = vld [vmem:[#allocation10 + $0x30] sm:$0xff]
    %v357 = vld [vmem:[#allocation10 + $0x38] sm:$0xff]
    %v358 = vld [vmem:[#allocation10 + $0x40] sm:$0xff]
    %v359 = vld [vmem:[#allocation10 + $0x48] sm:$0xff]
    %v360 = vld [vmem:[#allocation10 + $0x50] sm:$0xff]
    %v361 = vld [vmem:[#allocation10 + $0x58] sm:$0xff]
    %v362 = vld [vmem:[#allocation10 + $0x60] sm:$0xff]
    %v363 = vld [vmem:[#allocation10 + $0x68] sm:$0xff]
    %v364 = vld [vmem:[#allocation10 + $0x70] sm:$0xff]
    %v365 = vld [vmem:[#allocation10 + $0x78] sm:$0xff]
    %366 = vmatprep.subr.mxu0 0.0
    %367 = vmatpush1.msra.mxu0 %v350
    %368 = vmatprep.subr.mxu0 0.0
    %369 = vmatpush1.msra.mxu0 %v351
    %370 = vmatprep.subr.mxu0 0.0
    %371 = vmatpush1.msra.mxu0 %v352
    %372 = vmatprep.subr.mxu0 0.0
    %373 = vmatpush1.msra.mxu0 %v353
    %374 = vmatprep.subr.mxu0 0.0
    %375 = vmatpush1.msra.mxu0 %v354
    %376 = vmatprep.subr.mxu0 0.0
    %377 = vmatpush1.msra.mxu0 %v355
    %378 = vmatprep.subr.mxu0 0.0
    %379 = vmatpush1.msra.mxu0 %v356
    %380 = vmatprep.subr.mxu0 0.0
    %381 = vmatpush1.msra.mxu0 %v357
    %382 = vmatprep.subr.mxu0 0.0
    %383 = vmatpush1.msra.mxu0 %v358
    %384 = vmatprep.subr.mxu0 0.0
    %385 = vmatpush1.msra.mxu0 %v359
    %386 = vmatprep.subr.mxu0 0.0
    %387 = vmatpush1.msra.mxu0 %v360
    %388 = vmatprep.subr.mxu0 0.0
    %389 = vmatpush1.msra.mxu0 %v361
    %390 = vmatprep.subr.mxu0 0.0
    %391 = vmatpush1.msra.mxu0 %v362
    %392 = vmatprep.subr.mxu0 0.0
    %393 = vmatpush1.msra.mxu0 %v363
    %394 = vmatprep.subr.mxu0 0.0
    %395 = vmatpush1.msra.mxu0 %v364
    %396 = vmatprep.subr.mxu0 0.0
    %397 = vmatpush1.msra.mxu0 %v365
    %398 = vmatprep.subr.mxu0 0.0
    %399 = vmatpush1.msra.mxu0 0.0
    %400 = vmatprep.subr.mxu0 0.0
    %401 = vmatpush1.msra.mxu0 0.0
    %402 = vmatprep.subr.mxu0 0.0
    %403 = vmatpush1.msra.mxu0 0.0
    %404 = vmatprep.subr.mxu0 0.0
    %405 = vmatpush1.msra.mxu0 0.0
    %406 = vmatprep.subr.mxu0 0.0
    %407 = vmatpush1.msra.mxu0 0.0
    %408 = vmatprep.subr.mxu0 0.0
    %409 = vmatpush1.msra.mxu0 0.0
    %410 = vmatprep.subr.mxu0 0.0
    %411 = vmatpush1.msra.mxu0 0.0
    %412 = vmatprep.subr.mxu0 0.0
    %413 = vmatpush1.msra.mxu0 0.0
    %414 = vmatprep.subr.mxu0 0.0
    %415 = vmatpush1.msra.mxu0 0.0
    %416 = vmatprep.subr.mxu0 0.0
    %417 = vmatpush1.msra.mxu0 0.0
    %418 = vmatprep.subr.mxu0 0.0
    %419 = vmatpush1.msra.mxu0 0.0
    %420 = vmatprep.subr.mxu0 0.0
    %421 = vmatpush1.msra.mxu0 0.0
    %422 = vmatprep.subr.mxu0 0.0
    %423 = vmatpush1.msra.mxu0 0.0
    %424 = vmatprep.subr.mxu0 0.0
    %425 = vmatpush1.msra.mxu0 0.0
    %426 = vmatprep.subr.mxu0 0.0
    %427 = vmatpush1.msra.mxu0 0.0
    %428 = vmatprep.subr.mxu0 0.0
    %429 = vmatpush1.msra.mxu0 0.0
    %430 = vmatprep.mubr.f32.mxu0 0.0
    %431 = vmatmul.mubr.f32.gmra.mrb[0].mxu0 %v348
    %v432 = vpop.f32.mrb[0].mxu0
    %v433 = vadd.f32 0.0, %v432
    %v434 = vpop.f32.mrb[0].mxu0
    %435 = vmatprep.mubr.f32.mxu0 0.0
    %436 = vmatmul.mubr.f32.gmra.mrb[0].mxu0 %v349
    %v437 = vpop.f32.mrb[0].mxu0
    %v438 = vadd.f32 0.0, %v437
    %v439 = vpop.f32.mrb[0].mxu0
    %440 = vdwg.mxu0
    %v441 = vld [vmem:[#allocation11] sm:$0xff]
    %v442 = vld [vmem:[#allocation11 + $0x8] sm:$0xff]
    %v443 = vld [vmem:[#allocation11 + $0x10] sm:$0xff]
    %v444 = vld [vmem:[#allocation11 + $0x18] sm:$0xff]
    %v445 = vld [vmem:[#allocation11 + $0x20] sm:$0xff]
    %v446 = vld [vmem:[#allocation11 + $0x28] sm:$0xff]
    %v447 = vld [vmem:[#allocation11 + $0x30] sm:$0xff]
    %v448 = vld [vmem:[#allocation11 + $0x38] sm:$0xff]
    %v449 = vld [vmem:[#allocation11 + $0x40] sm:$0xff]
    %v450 = vld [vmem:[#allocation11 + $0x48] sm:$0xff]
    %v451 = vld [vmem:[#allocation11 + $0x50] sm:$0xff]
    %v452 = vld [vmem:[#allocation11 + $0x58] sm:$0xff]
    %v453 = vld [vmem:[#allocation11 + $0x60] sm:$0xff]
    %v454 = vld [vmem:[#allocation11 + $0x68] sm:$0xff]
    %v455 = vld [vmem:[#allocation11 + $0x70] sm:$0xff]
    %v456 = vld [vmem:[#allocation11 + $0x78] sm:$0xff]
    %457 = vmatprep.subr.mxu0 0.0
    %458 = vmatpush1.msra.mxu0 %v441
    %459 = vmatprep.subr.mxu0 0.0
    %460 = vmatpush1.msra.mxu0 %v442
    %461 = vmatprep.subr.mxu0 0.0
    %462 = vmatpush1.msra.mxu0 %v443
    %463 = vmatprep.subr.mxu0 0.0
    %464 = vmatpush1.msra.mxu0 %v444
    %465 = vmatprep.subr.mxu0 0.0
    %466 = vmatpush1.msra.mxu0 %v445
    %467 = vmatprep.subr.mxu0 0.0
    %468 = vmatpush1.msra.mxu0 %v446
    %469 = vmatprep.subr.mxu0 0.0
    %470 = vmatpush1.msra.mxu0 %v447
    %471 = vmatprep.subr.mxu0 0.0
    %472 = vmatpush1.msra.mxu0 %v448
    %473 = vmatprep.subr.mxu0 0.0
    %474 = vmatpush1.msra.mxu0 %v449
    %475 = vmatprep.subr.mxu0 0.0
    %476 = vmatpush1.msra.mxu0 %v450
    %477 = vmatprep.subr.mxu0 0.0
    %478 = vmatpush1.msra.mxu0 %v451
    %479 = vmatprep.subr.mxu0 0.0
    %480 = vmatpush1.msra.mxu0 %v452
    %481 = vmatprep.subr.mxu0 0.0
    %482 = vmatpush1.msra.mxu0 %v453
    %483 = vmatprep.subr.mxu0 0.0
    %484 = vmatpush1.msra.mxu0 %v454
    %485 = vmatprep.subr.mxu0 0.0
    %486 = vmatpush1.msra.mxu0 %v455
    %487 = vmatprep.subr.mxu0 0.0
    %488 = vmatpush1.msra.mxu0 %v456
    %489 = vmatprep.subr.mxu0 0.0
    %490 = vmatpush1.msra.mxu0 0.0
    %491 = vmatprep.subr.mxu0 0.0
    %492 = vmatpush1.msra.mxu0 0.0
    %493 = vmatprep.subr.mxu0 0.0
    %494 = vmatpush1.msra.mxu0 0.0
    %495 = vmatprep.subr.mxu0 0.0
    %496 = vmatpush1.msra.mxu0 0.0
    %497 = vmatprep.subr.mxu0 0.0
    %498 = vmatpush1.msra.mxu0 0.0
    %499 = vmatprep.subr.mxu0 0.0
    %500 = vmatpush1.msra.mxu0 0.0
    %501 = vmatprep.subr.mxu0 0.0
    %502 = vmatpush1.msra.mxu0 0.0
    %503 = vmatprep.subr.mxu0 0.0
    %504 = vmatpush1.msra.mxu0 0.0
    %505 = vmatprep.subr.mxu0 0.0
    %506 = vmatpush1.msra.mxu0 0.0
    %507 = vmatprep.subr.mxu0 0.0
    %508 = vmatpush1.msra.mxu0 0.0
    %509 = vmatprep.subr.mxu0 0.0
    %510 = vmatpush1.msra.mxu0 0.0
    %511 = vmatprep.subr.mxu0 0.0
    %512 = vmatpush1.msra.mxu0 0.0
    %513 = vmatprep.subr.mxu0 0.0
    %514 = vmatpush1.msra.mxu0 0.0
    %515 = vmatprep.subr.mxu0 0.0
    %516 = vmatpush1.msra.mxu0 0.0
    %517 = vmatprep.subr.mxu0 0.0
    %518 = vmatpush1.msra.mxu0 0.0
    %519 = vmatprep.subr.mxu0 0.0
    %520 = vmatpush1.msra.mxu0 0.0
    %521 = vmatprep.mubr.f32.mxu0 0.0
    %522 = vmatmul.mubr.f32.gmra.mrb[0].mxu0 %v340
    %v523 = vpop.f32.mrb[0].mxu0
    %v524 = vadd.f32 0.0, %v523
    %v525 = vpop.f32.mrb[0].mxu0
    %526 = vmatprep.mubr.f32.mxu0 0.0
    %527 = vmatmul.mubr.f32.gmra.mrb[0].mxu0 %v345
    %v528 = vpop.f32.mrb[0].mxu0
    %v529 = vadd.f32 0.0, %v528
    %v530 = vpop.f32.mrb[0].mxu0
    %531 = vdwg.mxu0
    %v532 = vld [vmem:[#allocation13] sm:$0xff]
    %v533 = vld [vmem:[#allocation13 + $0x8] sm:$0xff]
    %v534 = vld [vmem:[#allocation13 + $0x10] sm:$0xff]
    %v535 = vld [vmem:[#allocation13 + $0x18] sm:$0xff]
    %v536 = vld [vmem:[#allocation13 + $0x20] sm:$0xff]
    %v537 = vld [vmem:[#allocation13 + $0x28] sm:$0xff]
    %v538 = vld [vmem:[#allocation13 + $0x30] sm:$0xff]
    %v539 = vld [vmem:[#allocation13 + $0x38] sm:$0xff]
    %v540 = vld [vmem:[#allocation13 + $0x40] sm:$0xff]
    %v541 = vld [vmem:[#allocation13 + $0x48] sm:$0xff]
    %v542 = vld [vmem:[#allocation13 + $0x50] sm:$0xff]
    %v543 = vld [vmem:[#allocation13 + $0x58] sm:$0xff]
    %v544 = vld [vmem:[#allocation13 + $0x60] sm:$0xff]
    %v545 = vld [vmem:[#allocation13 + $0x68] sm:$0xff]
    %v546 = vld [vmem:[#allocation13 + $0x70] sm:$0xff]
    %v547 = vld [vmem:[#allocation13 + $0x78] sm:$0xff]
    %548 = vmatprep.subr.mxu0 0.0
    %549 = vmatpush1.msra.mxu0 %v532
    %550 = vmatprep.subr.mxu0 0.0
    %551 = vmatpush1.msra.mxu0 %v533
    %552 = vmatprep.subr.mxu0 0.0
    %553 = vmatpush1.msra.mxu0 %v534
    %554 = vmatprep.subr.mxu0 0.0
    %555 = vmatpush1.msra.mxu0 %v535
    %556 = vmatprep.subr.mxu0 0.0
    %557 = vmatpush1.msra.mxu0 %v536
    %558 = vmatprep.subr.mxu0 0.0
    %559 = vmatpush1.msra.mxu0 %v537
    %560 = vmatprep.subr.mxu0 0.0
    %561 = vmatpush1.msra.mxu0 %v538
    %562 = vmatprep.subr.mxu0 0.0
    %563 = vmatpush1.msra.mxu0 %v539
    %564 = vmatprep.subr.mxu0 0.0
    %565 = vmatpush1.msra.mxu0 %v540
    %566 = vmatprep.subr.mxu0 0.0
    %567 = vmatpush1.msra.mxu0 %v541
    %568 = vmatprep.subr.mxu0 0.0
    %569 = vmatpush1.msra.mxu0 %v542
    %570 = vmatprep.subr.mxu0 0.0
    %571 = vmatpush1.msra.mxu0 %v543
    %572 = vmatprep.subr.mxu0 0.0
    %573 = vmatpush1.msra.mxu0 %v544
    %574 = vmatprep.subr.mxu0 0.0
    %575 = vmatpush1.msra.mxu0 %v545
    %576 = vmatprep.subr.mxu0 0.0
    %577 = vmatpush1.msra.mxu0 %v546
    %578 = vmatprep.subr.mxu0 0.0
    %579 = vmatpush1.msra.mxu0 %v547
    %580 = vmatprep.subr.mxu0 0.0
    %581 = vmatpush1.msra.mxu0 0.0
    %582 = vmatprep.subr.mxu0 0.0
    %583 = vmatpush1.msra.mxu0 0.0
    %584 = vmatprep.subr.mxu0 0.0
    %585 = vmatpush1.msra.mxu0 0.0
    %586 = vmatprep.subr.mxu0 0.0
    %587 = vmatpush1.msra.mxu0 0.0
    %588 = vmatprep.subr.mxu0 0.0
    %589 = vmatpush1.msra.mxu0 0.0
    %590 = vmatprep.subr.mxu0 0.0
    %591 = vmatpush1.msra.mxu0 0.0
    %592 = vmatprep.subr.mxu0 0.0
    %593 = vmatpush1.msra.mxu0 0.0
    %594 = vmatprep.subr.mxu0 0.0
    %595 = vmatpush1.msra.mxu0 0.0
    %596 = vmatprep.subr.mxu0 0.0
    %597 = vmatpush1.msra.mxu0 0.0
    %598 = vmatprep.subr.mxu0 0.0
    %599 = vmatpush1.msra.mxu0 0.0
    %600 = vmatprep.subr.mxu0 0.0
    %601 = vmatpush1.msra.mxu0 0.0
    %602 = vmatprep.subr.mxu0 0.0
    %603 = vmatpush1.msra.mxu0 0.0
    %604 = vmatprep.subr.mxu0 0.0
    %605 = vmatpush1.msra.mxu0 0.0
    %606 = vmatprep.subr.mxu0 0.0
    %607 = vmatpush1.msra.mxu0 0.0
    %608 = vmatprep.subr.mxu0 0.0
    %609 = vmatpush1.msra.mxu0 0.0
    %610 = vmatprep.subr.mxu0 0.0
    %611 = vmatpush1.msra.mxu0 0.0
    %612 = vmatprep.mubr.f32.mxu0 0.0
    %613 = vmatmul.mubr.f32.gmra.mrb[0].mxu0 %v340
    %v614 = vpop.f32.mrb[0].mxu0
    %v615 = vadd.f32 0.0, %v614
    %v616 = vpop.f32.mrb[0].mxu0
    %617 = vmatprep.mubr.f32.mxu0 0.0
    %618 = vmatmul.mubr.f32.gmra.mrb[0].mxu0 %v345
    %v619 = vpop.f32.mrb[0].mxu0
    %v620 = vadd.f32 0.0, %v619
    %v621 = vpop.f32.mrb[0].mxu0
    %622 = vdwg.mxu0
    %623 = vmatprep.subr.mxu0 0.0
    %624 = vmatpush1.xpose.msra.mxu0 %v524
    %625 = vmatprep.subr.mxu0 0.0
    %626 = vmatpush1.xpose.msra.mxu0 0.0
    %627 = vmatprep.subr.mxu0 0.0
    %628 = vmatpush1.xpose.msra.mxu0 0.0
    %629 = vmatprep.subr.mxu0 0.0
    %630 = vmatpush1.xpose.msra.mxu0 0.0
    %631 = vmatprep.subr.mxu0 0.0
    %632 = vmatpush1.xpose.msra.mxu0 0.0
    %633 = vmatprep.subr.mxu0 0.0
    %634 = vmatpush1.xpose.msra.mxu0 0.0
    %635 = vmatprep.subr.mxu0 0.0
    %636 = vmatpush1.xpose.msra.mxu0 0.0
    %637 = vmatprep.subr.mxu0 0.0
    %638 = vmatpush1.xpose.msra.mxu0 0.0
    %639 = vmatprep.subr.mxu0 0.0
    %640 = vmatpush1.xpose.msra.mxu0 0.0
    %641 = vmatprep.subr.mxu0 0.0
    %642 = vmatpush1.xpose.msra.mxu0 0.0
    %643 = vmatprep.subr.mxu0 0.0
    %644 = vmatpush1.xpose.msra.mxu0 0.0
    %645 = vmatprep.subr.mxu0 0.0
    %646 = vmatpush1.xpose.msra.mxu0 0.0
    %647 = vmatprep.subr.mxu0 0.0
    %648 = vmatpush1.xpose.msra.mxu0 0.0
    %649 = vmatprep.subr.mxu0 0.0
    %650 = vmatpush1.xpose.msra.mxu0 0.0
    %651 = vmatprep.subr.mxu0 0.0
    %652 = vmatpush1.xpose.msra.mxu0 0.0
    %653 = vmatprep.subr.mxu0 0.0
    %654 = vmatpush1.xpose.msra.mxu0 0.0
    %655 = vmatprep.subr.mxu0 0.0
    %656 = vmatpush1.xpose.msra.mxu0 0.0
    %657 = vmatprep.subr.mxu0 0.0
    %658 = vmatpush1.xpose.msra.mxu0 0.0
    %659 = vmatprep.subr.mxu0 0.0
    %660 = vmatpush1.xpose.msra.mxu0 0.0
    %661 = vmatprep.subr.mxu0 0.0
    %662 = vmatpush1.xpose.msra.mxu0 0.0
    %663 = vmatprep.subr.mxu0 0.0
    %664 = vmatpush1.xpose.msra.mxu0 0.0
    %665 = vmatprep.subr.mxu0 0.0
    %666 = vmatpush1.xpose.msra.mxu0 0.0
    %667 = vmatprep.subr.mxu0 0.0
    %668 = vmatpush1.xpose.msra.mxu0 0.0
    %669 = vmatprep.subr.mxu0 0.0
    %670 = vmatpush1.xpose.msra.mxu0 0.0
    %671 = vmatprep.subr.mxu0 0.0
    %672 = vmatpush1.xpose.msra.mxu0 0.0
    %673 = vmatprep.subr.mxu0 0.0
    %674 = vmatpush1.xpose.msra.mxu0 0.0
    %675 = vmatprep.subr.mxu0 0.0
    %676 = vmatpush1.xpose.msra.mxu0 0.0
    %677 = vmatprep.subr.mxu0 0.0
    %678 = vmatpush1.xpose.msra.mxu0 0.0
    %679 = vmatprep.subr.mxu0 0.0
    %680 = vmatpush1.xpose.msra.mxu0 0.0
    %681 = vmatprep.subr.mxu0 0.0
    %682 = vmatpush1.xpose.msra.mxu0 0.0
    %683 = vmatprep.subr.mxu0 0.0
    %684 = vmatpush1.xpose.msra.mxu0 0.0
    %685 = vmatprep.subr.mxu0 0.0
    %686 = vmatpush1.xpose.msra.mxu0 0.0
    %687 = vmatprep.mubr.f32.mxu0 0.0
    %688 = vmatmul.mubr.f32.gmra.mrb[0].mxu0 %v433
    %v689 = vpop.f32.mrb[0].mxu0
    %v690 = vadd.f32 0.0, %v689
    %v691 = vpop.f32.mrb[0].mxu0
    %692 = vdwg.mxu0
    %693 = vmatprep.subr.mxu0 0.0
    %694 = vmatpush1.xpose.msra.mxu0 %v529
    %695 = vmatprep.subr.mxu0 0.0
    %696 = vmatpush1.xpose.msra.mxu0 0.0
    %697 = vmatprep.subr.mxu0 0.0
    %698 = vmatpush1.xpose.msra.mxu0 0.0
    %699 = vmatprep.subr.mxu0 0.0
    %700 = vmatpush1.xpose.msra.mxu0 0.0
    %701 = vmatprep.subr.mxu0 0.0
    %702 = vmatpush1.xpose.msra.mxu0 0.0
    %703 = vmatprep.subr.mxu0 0.0
    %704 = vmatpush1.xpose.msra.mxu0 0.0
    %705 = vmatprep.subr.mxu0 0.0
    %706 = vmatpush1.xpose.msra.mxu0 0.0
    %707 = vmatprep.subr.mxu0 0.0
    %708 = vmatpush1.xpose.msra.mxu0 0.0
    %709 = vmatprep.subr.mxu0 0.0
    %710 = vmatpush1.xpose.msra.mxu0 0.0
    %711 = vmatprep.subr.mxu0 0.0
    %712 = vmatpush1.xpose.msra.mxu0 0.0
    %713 = vmatprep.subr.mxu0 0.0
    %714 = vmatpush1.xpose.msra.mxu0 0.0
    %715 = vmatprep.subr.mxu0 0.0
    %716 = vmatpush1.xpose.msra.mxu0 0.0
    %717 = vmatprep.subr.mxu0 0.0
    %718 = vmatpush1.xpose.msra.mxu0 0.0
    %719 = vmatprep.subr.mxu0 0.0
    %720 = vmatpush1.xpose.msra.mxu0 0.0
    %721 = vmatprep.subr.mxu0 0.0
    %722 = vmatpush1.xpose.msra.mxu0 0.0
    %723 = vmatprep.subr.mxu0 0.0
    %724 = vmatpush1.xpose.msra.mxu0 0.0
    %725 = vmatprep.subr.mxu0 0.0
    %726 = vmatpush1.xpose.msra.mxu0 0.0
    %727 = vmatprep.subr.mxu0 0.0
    %728 = vmatpush1.xpose.msra.mxu0 0.0
    %729 = vmatprep.subr.mxu0 0.0
    %730 = vmatpush1.xpose.msra.mxu0 0.0
    %731 = vmatprep.subr.mxu0 0.0
    %732 = vmatpush1.xpose.msra.mxu0 0.0
    %733 = vmatprep.subr.mxu0 0.0
    %734 = vmatpush1.xpose.msra.mxu0 0.0
    %735 = vmatprep.subr.mxu0 0.0
    %736 = vmatpush1.xpose.msra.mxu0 0.0
    %737 = vmatprep.subr.mxu0 0.0
    %738 = vmatpush1.xpose.msra.mxu0 0.0
    %739 = vmatprep.subr.mxu0 0.0
    %740 = vmatpush1.xpose.msra.mxu0 0.0
    %741 = vmatprep.subr.mxu0 0.0
    %742 = vmatpush1.xpose.msra.mxu0 0.0
    %743 = vmatprep.subr.mxu0 0.0
    %744 = vmatpush1.xpose.msra.mxu0 0.0
    %745 = vmatprep.subr.mxu0 0.0
    %746 = vmatpush1.xpose.msra.mxu0 0.0
    %747 = vmatprep.subr.mxu0 0.0
    %748 = vmatpush1.xpose.msra.mxu0 0.0
    %749 = vmatprep.subr.mxu0 0.0
    %750 = vmatpush1.xpose.msra.mxu0 0.0
    %751 = vmatprep.subr.mxu0 0.0
    %752 = vmatpush1.xpose.msra.mxu0 0.0
    %753 = vmatprep.subr.mxu0 0.0
    %754 = vmatpush1.xpose.msra.mxu0 0.0
    %755 = vmatprep.subr.mxu0 0.0
    %756 = vmatpush1.xpose.msra.mxu0 0.0
    %757 = vmatprep.mubr.f32.mxu0 0.0
    %758 = vmatmul.mubr.f32.gmra.mrb[0].mxu0 %v438
    %v759 = vpop.f32.mrb[0].mxu0
    %v760 = vadd.f32 0.0, %v759
    %v761 = vpop.f32.mrb[0].mxu0
    %762 = vdwg.mxu0
    %v763 = vmul.f32 %v690, 0.17677669
    %v764 = vmul.f32 %v760, 0.17677669
    %vm765 = vcmask 64512
    %v766 = vsel %vm765, %v763, -inf
    %767 = vmax.xlane.f32.xlu0 %v766
    %v768 = vpop.xlane.xlu0 %767
    %v769 = vsel %vm765, %v764, -inf
    %770 = vmax.xlane.f32.xlu0 %v769
    %v771 = vpop.xlane.xlu0 %770
    %v772 = vsub.f32 %v763, %v768
    %v773 = vsub.f32 %v764, %v771
    %v774 = vmul.f32 %v772, 1.442695
    %v775 = vpow.pop %v774
    %v776 = vmul.f32 %v773, 1.442695
    %v777 = vpow.pop %v776
    %v778 = vsel %vm765, %v775, 0.0
    %779 = vadd.xlane.f32.xlu0 %v778
    %v780 = vpop.xlane.xlu0 %779
    %v781 = vsel %vm765, %v777, 0.0
    %782 = vadd.xlane.f32.xlu0 %v781
    %v783 = vpop.xlane.xlu0 %782
    %v784 = vrcp.pop %v780
    %v785 = vrcp.pop %v783
    %v786 = vmul.f32 %v775, %v784
    %v787 = vmul.f32 %v777, %v785
    %v789 = vsel %vm765, %v786, 0
    %791 = vmatprep.subr.mxu0 0.0
    %792 = vmatpush1.msra.mxu0 %v615
    %793 = vmatprep.subr.mxu0 0.0
    %794 = vmatpush1.msra.mxu0 0.0
    %795 = vmatprep.subr.mxu0 0.0
    %796 = vmatpush1.msra.mxu0 0.0
    %797 = vmatprep.subr.mxu0 0.0
    %798 = vmatpush1.msra.mxu0 0.0
    %799 = vmatprep.subr.mxu0 0.0
    %800 = vmatpush1.msra.mxu0 0.0
    %801 = vmatprep.subr.mxu0 0.0
    %802 = vmatpush1.msra.mxu0 0.0
    %803 = vmatprep.subr.mxu0 0.0
    %804 = vmatpush1.msra.mxu0 0.0
    %805 = vmatprep.subr.mxu0 0.0
    %806 = vmatpush1.msra.mxu0 0.0
    %807 = vmatprep.subr.mxu0 0.0
    %808 = vmatpush1.msra.mxu0 0.0
    %809 = vmatprep.subr.mxu0 0.0
    %810 = vmatpush1.msra.mxu0 0.0
    %811 = vmatprep.subr.mxu0 0.0
    %812 = vmatpush1.msra.mxu0 0.0
    %813 = vmatprep.subr.mxu0 0.0
    %814 = vmatpush1.msra.mxu0 0.0
    %815 = vmatprep.subr.mxu0 0.0
    %816 = vmatpush1.msra.mxu0 0.0
    %817 = vmatprep.subr.mxu0 0.0
    %818 = vmatpush1.msra.mxu0 0.0
    %819 = vmatprep.subr.mxu0 0.0
    %820 = vmatpush1.msra.mxu0 0.0
    %821 = vmatprep.subr.mxu0 0.0
    %822 = vmatpush1.msra.mxu0 0.0
    %823 = vmatprep.subr.mxu0 0.0
    %824 = vmatpush1.msra.mxu0 0.0
    %825 = vmatprep.subr.mxu0 0.0
    %826 = vmatpush1.msra.mxu0 0.0
    %827 = vmatprep.subr.mxu0 0.0
    %828 = vmatpush1.msra.mxu0 0.0
    %829 = vmatprep.subr.mxu0 0.0
    %830 = vmatpush1.msra.mxu0 0.0
    %831 = vmatprep.subr.mxu0 0.0
    %832 = vmatpush1.msra.mxu0 0.0
    %833 = vmatprep.subr.mxu0 0.0
    %834 = vmatpush1.msra.mxu0 0.0
    %835 = vmatprep.subr.mxu0 0.0
    %836 = vmatpush1.msra.mxu0 0.0
    %837 = vmatprep.subr.mxu0 0.0
    %838 = vmatpush1.msra.mxu0 0.0
    %839 = vmatprep.subr.mxu0 0.0
    %840 = vmatpush1.msra.mxu0 0.0
    %841 = vmatprep.subr.mxu0 0.0
    %842 = vmatpush1.msra.mxu0 0.0
    %843 = vmatprep.subr.mxu0 0.0
    %844 = vmatpush1.msra.mxu0 0.0
    %845 = vmatprep.subr.mxu0 0.0
    %846 = vmatpush1.msra.mxu0 0.0
    %847 = vmatprep.subr.mxu0 0.0
    %848 = vmatpush1.msra.mxu0 0.0
    %849 = vmatprep.subr.mxu0 0.0
    %850 = vmatpush1.msra.mxu0 0.0
    %851 = vmatprep.subr.mxu0 0.0
    %852 = vmatpush1.msra.mxu0 0.0
    %853 = vmatprep.subr.mxu0 0.0
    %854 = vmatpush1.msra.mxu0 0.0
    %855 = vmatprep.mubr.f32.mxu0 0.0
    %856 = vmatmul.mubr.f32.gmra.mrb[0].mxu0 %v789
    %v857 = vpop.f32.mrb[0].mxu0
    %v858 = vadd.f32 0.0, %v857
    %v859 = vpop.f32.mrb[0].mxu0
    %860 = vdwg.mxu0
    %v862 = vsel %vm765, %v787, 0
    %864 = vmatprep.subr.mxu0 0.0
    %865 = vmatpush1.msra.mxu0 %v620
    %866 = vmatprep.subr.mxu0 0.0
    %867 = vmatpush1.msra.mxu0 0.0
    %868 = vmatprep.subr.mxu0 0.0
    %869 = vmatpush1.msra.mxu0 0.0
    %870 = vmatprep.subr.mxu0 0.0
    %871 = vmatpush1.msra.mxu0 0.0
    %872 = vmatprep.subr.mxu0 0.0
    %873 = vmatpush1.msra.mxu0 0.0
    %874 = vmatprep.subr.mxu0 0.0
    %875 = vmatpush1.msra.mxu0 0.0
    %876 = vmatprep.subr.mxu0 0.0
    %877 = vmatpush1.msra.mxu0 0.0
    %878 = vmatprep.subr.mxu0 0.0
    %879 = vmatpush1.msra.mxu0 0.0
    %880 = vmatprep.subr.mxu0 0.0
    %881 = vmatpush1.msra.mxu0 0.0
    %882 = vmatprep.subr.mxu0 0.0
    %883 = vmatpush1.msra.mxu0 0.0
    %884 = vmatprep.subr.mxu0 0.0
    %885 = vmatpush1.msra.mxu0 0.0
    %886 = vmatprep.subr.mxu0 0.0
    %887 = vmatpush1.msra.mxu0 0.0
    %888 = vmatprep.subr.mxu0 0.0
    %889 = vmatpush1.msra.mxu0 0.0
    %890 = vmatprep.subr.mxu0 0.0
    %891 = vmatpush1.msra.mxu0 0.0
    %892 = vmatprep.subr.mxu0 0.0
    %893 = vmatpush1.msra.mxu0 0.0
    %894 = vmatprep.subr.mxu0 0.0
    %895 = vmatpush1.msra.mxu0 0.0
    %896 = vmatprep.subr.mxu0 0.0
    %897 = vmatpush1.msra.mxu0 0.0
    %898 = vmatprep.subr.mxu0 0.0
    %899 = vmatpush1.msra.mxu0 0.0
    %900 = vmatprep.subr.mxu0 0.0
    %901 = vmatpush1.msra.mxu0 0.0
    %902 = vmatprep.subr.mxu0 0.0
    %903 = vmatpush1.msra.mxu0 0.0
    %904 = vmatprep.subr.mxu0 0.0
    %905 = vmatpush1.msra.mxu0 0.0
    %906 = vmatprep.subr.mxu0 0.0
    %907 = vmatpush1.msra.mxu0 0.0
    %908 = vmatprep.subr.mxu0 0.0
    %909 = vmatpush1.msra.mxu0 0.0
    %910 = vmatprep.subr.mxu0 0.0
    %911 = vmatpush1.msra.mxu0 0.0
    %912 = vmatprep.subr.mxu0 0.0
    %913 = vmatpush1.msra.mxu0 0.0
    %914 = vmatprep.subr.mxu0 0.0
    %915 = vmatpush1.msra.mxu0 0.0
    %916 = vmatprep.subr.mxu0 0.0
    %917 = vmatpush1.msra.mxu0 0.0
    %918 = vmatprep.subr.mxu0 0.0
    %919 = vmatpush1.msra.mxu0 0.0
    %920 = vmatprep.subr.mxu0 0.0
    %921 = vmatpush1.msra.mxu0 0.0
    %922 = vmatprep.subr.mxu0 0.0
    %923 = vmatpush1.msra.mxu0 0.0
    %924 = vmatprep.subr.mxu0 0.0
    %925 = vmatpush1.msra.mxu0 0.0
    %926 = vmatprep.subr.mxu0 0.0
    %927 = vmatpush1.msra.mxu0 0.0
    %928 = vmatprep.mubr.f32.mxu0 0.0
    %929 = vmatmul.mubr.f32.gmra.mrb[0].mxu0 %v862
    %v930 = vpop.f32.mrb[0].mxu0
    %v931 = vadd.f32 0.0, %v930
    %v932 = vpop.f32.mrb[0].mxu0
    %933 = vdwg.mxu0
    %v934 = vld [vmem:[#allocation14] sm:$0xff]
    %v935 = vld [vmem:[#allocation14 + $0x8] sm:$0xff]
    %v936 = vld [vmem:[#allocation14 + $0x10] sm:$0xff]
    %v937 = vld [vmem:[#allocation14 + $0x18] sm:$0xff]
    %v938 = vld [vmem:[#allocation14 + $0x20] sm:$0xff]
    %v939 = vld [vmem:[#allocation14 + $0x28] sm:$0xff]
    %v940 = vld [vmem:[#allocation14 + $0x30] sm:$0xff]
    %v941 = vld [vmem:[#allocation14 + $0x38] sm:$0xff]
    %v942 = vld [vmem:[#allocation14 + $0x40] sm:$0xff]
    %v943 = vld [vmem:[#allocation14 + $0x48] sm:$0xff]
    %v944 = vld [vmem:[#allocation14 + $0x50] sm:$0xff]
    %v945 = vld [vmem:[#allocation14 + $0x58] sm:$0xff]
    %v946 = vld [vmem:[#allocation14 + $0x60] sm:$0xff]
    %v947 = vld [vmem:[#allocation14 + $0x68] sm:$0xff]
    %v948 = vld [vmem:[#allocation14 + $0x70] sm:$0xff]
    %v949 = vld [vmem:[#allocation14 + $0x78] sm:$0xff]
    %v950 = vld [vmem:[%s10] sm:$0x1]
    %v952 = vlaneseq
    %v953 = vshrl.u32 %v952, 7
    %v954 = vsub.s32 0, %v953
    %v955 = vrot.slane %v950, %v954
    %957 = vmatprep.subr.mxu0 0.0
    %958 = vmatpush1.msra.mxu0 %v934
    %959 = vmatprep.subr.mxu0 0.0
    %960 = vmatpush1.msra.mxu0 %v935
    %961 = vmatprep.subr.mxu0 0.0
    %962 = vmatpush1.msra.mxu0 %v936
    %963 = vmatprep.subr.mxu0 0.0
    %964 = vmatpush1.msra.mxu0 %v937
    %965 = vmatprep.subr.mxu0 0.0
    %966 = vmatpush1.msra.mxu0 %v938
    %967 = vmatprep.subr.mxu0 0.0
    %968 = vmatpush1.msra.mxu0 %v939
    %969 = vmatprep.subr.mxu0 0.0
    %970 = vmatpush1.msra.mxu0 %v940
    %971 = vmatprep.subr.mxu0 0.0
    %972 = vmatpush1.msra.mxu0 %v941
    %973 = vmatprep.subr.mxu0 0.0
    %974 = vmatpush1.msra.mxu0 %v942
    %975 = vmatprep.subr.mxu0 0.0
    %976 = vmatpush1.msra.mxu0 %v943
    %977 = vmatprep.subr.mxu0 0.0
    %978 = vmatpush1.msra.mxu0 %v944
    %979 = vmatprep.subr.mxu0 0.0
    %980 = vmatpush1.msra.mxu0 %v945
    %981 = vmatprep.subr.mxu0 0.0
    %982 = vmatpush1.msra.mxu0 %v946
    %983 = vmatprep.subr.mxu0 0.0
    %984 = vmatpush1.msra.mxu0 %v947
    %985 = vmatprep.subr.mxu0 0.0
    %986 = vmatpush1.msra.mxu0 %v948
    %987 = vmatprep.subr.mxu0 0.0
    %988 = vmatpush1.msra.mxu0 %v949
    %989 = vmatprep.subr.mxu0 0.0
    %990 = vmatpush1.msra.mxu0 0.0
    %991 = vmatprep.subr.mxu0 0.0
    %992 = vmatpush1.msra.mxu0 0.0
    %993 = vmatprep.subr.mxu0 0.0
    %994 = vmatpush1.msra.mxu0 0.0
    %995 = vmatprep.subr.mxu0 0.0
    %996 = vmatpush1.msra.mxu0 0.0
    %997 = vmatprep.subr.mxu0 0.0
    %998 = vmatpush1.msra.mxu0 0.0
    %999 = vmatprep.subr.mxu0 0.0
    %1000 = vmatpush1.msra.mxu0 0.0
    %1001 = vmatprep.subr.mxu0 0.0
    %1002 = vmatpush1.msra.mxu0 0.0
    %1003 = vmatprep.subr.mxu0 0.0
    %1004 = vmatpush1.msra.mxu0 0.0
    %1005 = vmatprep.subr.mxu0 0.0
    %1006 = vmatpush1.msra.mxu0 0.0
    %1007 = vmatprep.subr.mxu0 0.0
    %1008 = vmatpush1.msra.mxu0 0.0
    %1009 = vmatprep.subr.mxu0 0.0
    %1010 = vmatpush1.msra.mxu0 0.0
    %1011 = vmatprep.subr.mxu0 0.0
    %1012 = vmatpush1.msra.mxu0 0.0
    %1013 = vmatprep.subr.mxu0 0.0
    %1014 = vmatpush1.msra.mxu0 0.0
    %1015 = vmatprep.subr.mxu0 0.0
    %1016 = vmatpush1.msra.mxu0 0.0
    %1017 = vmatprep.subr.mxu0 0.0
    %1018 = vmatpush1.msra.mxu0 0.0
    %1019 = vmatprep.subr.mxu0 0.0
    %1020 = vmatpush1.msra.mxu0 0.0
    %1021 = vmatprep.mubr.f32.mxu0 0.0
    %1022 = vmatmul.mubr.f32.gmra.mrb[0].mxu0 %v858
    %v1023 = vpop.f32.mrb[0].mxu0
    %v1024 = vadd.f32 %v955, %v1023
    %v1025 = vpop.f32.mrb[0].mxu0
    %1026 = vmatprep.mubr.f32.mxu0 0.0
    %1027 = vmatmul.mubr.f32.gmra.mrb[0].mxu0 %v931
    %v1028 = vpop.f32.mrb[0].mxu0
    %v1029 = vadd.f32 %v955, %v1028
    %v1030 = vpop.f32.mrb[0].mxu0
    %1031 = vdwg.mxu0
    %1032 = vst [vmem:[#allocation16] sm:$0xff] %v1024
    %1033 = vst [vmem:[#allocation16 + $0x8] sm:$0xff] %v1029
    // Predicated region
    $region78: #{tpu_custom_call.1} parent=1 // pred_check
      _
    $region79: #{tpu_custom_call.1} parent=1 // pred_check_branch
      %1035 = sbr.rel (0) target = $region81
    $region80: #{tpu_custom_call.1} parent=1 // pred_region
      %s1037 = ssub.s32 256, 256
      %1038 = vsyncadd [#allocation4], %s1037
      %s1039 = sshll.u32 [#allocation16], 4
      %s1040 = int_to_ptr.vmem [resolvable:$true] %s1039
      %1045 = dma.vmem_to_hbm [thread:$0]  %s1040, 256, %s11, [#allocation4], 128, 128, 8
    $region81: #{tpu_custom_call.1} parent=1 // pred_fallthru
      _
    // Predicated region
    $region82: #{tpu_custom_call.1} parent=1 // pred_check
      _
    $region83: #{tpu_custom_call.1} parent=1 // pred_check_branch
      %1047 = sbr.rel (0) target = $region85
    $region84: #{tpu_custom_call.1} parent=1 // pred_region
      %1048 = dma.done [#allocation4], 256
    $region85: #{tpu_custom_call.1} parent=1 // pred_fallthru
      _
    %1049 = vsyncpa [#allocation3], 1
    %1050 = vsyncpa [#allocation6], 1
    %1051 = vsyncpa [#allocation9], 1
    %1052 = vsyncpa [#allocation12], 1
    %1053 = vsyncpa [#allocation15], 1
    %1054 = vsyncpa [#allocation4], 1

</llo_original>
